<compile_context>
chip_gen: v7x
topology: tpu7x:2x2x1
jax: 0.10.0
libtpu: 0.0.40
codegen_flags: <defaults>
</compile_context>

<pallas_src>
import jax
import jax.numpy as jnp
from jax import lax
from jax.experimental import pallas as pl
from jax.experimental.pallas import tpu as pltpu

D = 20  # feature dim of nn.Linear(20, 20)

# Row offsets inside the packed parameter slab (compacted to 48 rows).
_ROW_WF = 0     # [ 0:20)  W_fused = W.T @ rand_weight            (20, 20)
_ROW_BF = 20    # row 20   b_fused = b @ rand_weight + 1           (1, 20)
_ROW_WT = 24    # [24:44)  W.T  (pre-transposed at pack time)      (20, 20)
_ROW_B = 44     # row 44   b                                       (1, 20)
_SLAB_ROWS = 48


def pack_params(w, b, rand_weight):
    """One-time (module-init-style) parameter preparation.

    Fuses the fixed tensors of the first two matmuls, pre-transposes W, and
    packs everything into a single f32 slab so the kernel needs exactly one
    parameter DMA for the whole grid. Runs once per parameter set, NOT per
    forward call.
    """
    w = w.astype(jnp.float32)                 # (20, 20)  PyTorch (out, in)
    b = b.astype(jnp.float32)                 # (20,)
    rw = rand_weight.astype(jnp.float32)      # (20, 20)
    w_t = w.T                                 # (in, out): h @ w_t == h @ W.T
    w_fused = w_t @ rw                        # (20, 20)
    b_fused = b @ rw + 1.0                    # (20,)
    slab = jnp.zeros((_SLAB_ROWS, D), jnp.float32)
    slab = slab.at[_ROW_WF:_ROW_WF + D].set(w_fused)
    slab = slab.at[_ROW_BF].set(b_fused)
    slab = slab.at[_ROW_WT:_ROW_WT + D].set(w_t)
    slab = slab.at[_ROW_B].set(b)
    return slab


def fixed_hidden_mlp_kernel(x_ref, p_ref, o_ref):
    x = x_ref[...]                                   # (B, 20) f32
    w_fused = p_ref[_ROW_WF:_ROW_WF + D, :]          # (20, 20)
    b_fused = p_ref[_ROW_BF:_ROW_BF + 1, :]          # (1, 20)
    w_t = p_ref[_ROW_WT:_ROW_WT + D, :]              # (20, 20) == W.T
    b = p_ref[_ROW_B:_ROW_B + 1, :]                  # (1, 20)

    # relu((x @ W.T + b) @ RW + 1)  ==  relu(x @ W_fused + b_fused)
    h = jnp.maximum(
        jnp.dot(x, w_fused, preferred_element_type=jnp.float32) + b_fused, 0.0)
    # X = self.linear(X): plain dot against the pre-transposed weight.
    h = jnp.dot(h, w_t, preferred_element_type=jnp.float32) + b

    # while sum(|h|) > 1: h /= 2 ; return sum(h)
    # Halving commutes exactly with the sums, so carry only the two scalars.
    abs_sum = jnp.sum(jnp.sum(jnp.abs(h), axis=1, keepdims=True),
                      axis=0, keepdims=True)         # (1, 1)
    tot_sum = jnp.sum(jnp.sum(h, axis=1, keepdims=True),
                      axis=0, keepdims=True)         # (1, 1)

    # Exact halving count from the fp32 exponent field (no data-dep loop):
    #   abs_sum > 1, abs_sum == 2^E exactly (mant==0) -> n = E halvings
    #   abs_sum > 1, abs_sum == 1.mant * 2^E, E >= 0  -> n = E + 1
    #   abs_sum <= 1                                   -> n = 0
    bits = pltpu.bitcast(abs_sum, jnp.uint32)        # abs_sum >= 0, sign bit 0
    exp_unb = (bits >> 23).astype(jnp.int32) - 127   # unbiased exponent
    mant = bits & jnp.uint32(0x7FFFFF)               # mantissa field
    n = jnp.where(abs_sum > 1.0,
                  exp_unb + (mant != 0).astype(jnp.int32),
                  0)                                 # int32 (1,1), n >= 0

    # scale = 2^-n built exactly in the exponent field (n tiny here).
    scale = pltpu.bitcast((127 - n) << 23, jnp.float32)
    o_ref[...] = tot_sum * scale


def fixed_hidden_mlp_batched(xs, packed_params):
    """xs: (N, B, 20) f32 -- N independent FixedHiddenMLP forwards in one call.

    Returns (N, 1, 1) f32; [i, 0, 0] is sum(h_i) after the halving loop.
    """
    N, B, d = xs.shape
    assert d == D
    cost = pl.CostEstimate(
        flops=2 * (2 * N * B * D * D),     # two (B,D)x(D,D) MXU matmuls / inst
        transcendentals=0,
        bytes_accessed=int(xs.size) * 4 + int(packed_params.size) * 4 + N * 4,
    )
    return pl.pallas_call(
        fixed_hidden_mlp_kernel,
        out_shape=jax.ShapeDtypeStruct((N, 1, 1), jnp.float32),
        grid=(N,),
        in_specs=[
            # One instance per grid step (leading dim squeezed in-kernel).
            pl.BlockSpec((None, B, D), lambda i: (i, 0, 0)),
            # Constant index_map: slab stays VMEM-resident, one DMA total.
            pl.BlockSpec((_SLAB_ROWS, D), lambda i: (0, 0)),
        ],
        out_specs=pl.BlockSpec((None, 1, 1), lambda i: (i, 0, 0)),
        compiler_params=pltpu.CompilerParams(
            dimension_semantics=("parallel",)),
        cost_estimate=cost,
    )(xs, packed_params)


def fixed_hidden_mlp(x, packed_params):
    """Single PyTorch-spec forward: x (B, 20) -> scalar sum(h)."""
    return fixed_hidden_mlp_batched(x[None], packed_params)[0, 0, 0]


if __name__ == "__main__":
    key = jax.random.PRNGKey(0)
    k_x, k_rw, k_w, k_b, k_xs = jax.random.split(key, 5)

    B = 2
    # X = torch.rand(2, 20)
    x = jax.random.uniform(k_x, (B, D), dtype=jnp.float32)
    # self.rand_weight = torch.rand((20, 20))
    rand_weight = jax.random.uniform(k_rw, (D, D), dtype=jnp.float32)
    # nn.Linear(20, 20): weight/bias ~ U(-1/sqrt(20), 1/sqrt(20))
    bound = 1.0 / jnp.sqrt(jnp.float32(D))
    w = jax.random.uniform(k_w, (D, D), dtype=jnp.float32,
                           minval=-bound, maxval=bound)
    b = jax.random.uniform(k_b, (D,), dtype=jnp.float32,
                           minval=-bound, maxval=bound)

    # One-time parameter fusion + packing (init-time, not per-call).
    params = pack_params(w, b, rand_weight)

    # Pure-JAX reference with the ORIGINAL (non-fused) op order and the real
    # data-dependent while-loop on the full tensor -- the PyTorch spec.
    def ref(xi, w, b, rw):
        h = xi @ w.T + b
        h = jnp.maximum(h @ rw + 1.0, 0.0)
        h = h @ w.T + b
        h = lax.while_loop(lambda hh: jnp.sum(jnp.abs(hh)) > 1.0,
                           lambda hh: hh / 2.0, h)
        return jnp.sum(h)

    # 1) Single forward exactly per the PyTorch spec (X = rand(2, 20)).
    result = fixed_hidden_mlp(x, params)
    jax.block_until_ready(result)
    expected = ref(x, w, b, rand_weight)
    assert jnp.allclose(result, expected, rtol=1e-4, atol=1e-4), (result, expected)

    # 2) Batched path: N independent X instances amortize the launch overhead
    #    in a single pallas_call with a "parallel" instance axis.
    N = 8
    xs = jax.random.uniform(k_xs, (N, B, D), dtype=jnp.float32)
    results = fixed_hidden_mlp_batched(xs, params)
    jax.block_until_ready(results)
    expected_batch = jnp.stack(
        [ref(xs[i], w, b, rand_weight) for i in range(N)])
    assert jnp.allclose(results[:, 0, 0], expected_batch,
                        rtol=1e-4, atol=1e-4), (results[:, 0, 0], expected_batch)

    print("KERNEL_OK")
</pallas_src>

<mosaic_0001>
module attributes {stable_mosaic.version = 11 : i64} {
  func.func @fixed_hidden_mlp_kernel(%arg0: i32, %arg1: memref<1x2x20xf32, #tpu.memory_space<vmem>>, %arg2: memref<48x20xf32, #tpu.memory_space<vmem>>, %arg3: memref<1x1x1xf32, #tpu.memory_space<vmem>>) attributes {dimension_semantics = [#tpu.dimension_semantics<parallel>], iteration_bounds = array<i64: 1>, scalar_prefetch = 0 : i64, scratch_operands = 0 : i64, tpu.core_type = #tpu.core_type<tc>, window_params = [{transform_indices = @transform_0, window_bounds = array<i64: 1, 2, 20>}, {pipeline_mode = #tpu.pipeline_mode<synchronous>, transform_indices = @transform_1, window_bounds = array<i64: 48, 20>}, {transform_indices = @transform_2, window_bounds = array<i64: 1, 1, 1>}]} {
    %c0 = arith.constant 0 : index
    %c0_0 = arith.constant 0 : index
    %c0_1 = arith.constant 0 : index
    %0 = vector.load %arg1[%c0, %c0_0, %c0_1] : memref<1x2x20xf32, #tpu.memory_space<vmem>>, vector<1x2x20xf32>
    %1 = vector.shape_cast %0 : vector<1x2x20xf32> to vector<2x20xf32>
    %c0_2 = arith.constant 0 : index
    %c0_3 = arith.constant 0 : index
    %2 = vector.load %arg2[%c0_2, %c0_3] : memref<48x20xf32, #tpu.memory_space<vmem>>, vector<20x20xf32>
    %c20 = arith.constant 20 : index
    %c0_4 = arith.constant 0 : index
    %3 = vector.load %arg2[%c20, %c0_4] : memref<48x20xf32, #tpu.memory_space<vmem>>, vector<1x20xf32>
    %c24 = arith.constant 24 : index
    %c0_5 = arith.constant 0 : index
    %4 = vector.load %arg2[%c24, %c0_5] : memref<48x20xf32, #tpu.memory_space<vmem>>, vector<20x20xf32>
    %c44 = arith.constant 44 : index
    %c0_6 = arith.constant 0 : index
    %5 = vector.load %arg2[%c44, %c0_6] : memref<48x20xf32, #tpu.memory_space<vmem>>, vector<1x20xf32>
    %cst = arith.constant dense<0.000000e+00> : vector<2x20xf32>
    %6 = tpu.matmul %1, %2, %cst {dimension_numbers = #tpu.dot_dimension_numbers<[1], [0], [0], [1], [0, 0, 1, 1], [], []>} : vector<2x20xf32>, vector<20x20xf32>, vector<2x20xf32> -> vector<2x20xf32>
    %7 = vector.broadcast %3 : vector<1x20xf32> to vector<2x20xf32>
    %8 = arith.addf %6, %7 : vector<2x20xf32>
    %cst_7 = arith.constant 0.000000e+00 : f32
    %9 = vector.broadcast %cst_7 : f32 to vector<2x20xf32>
    %10 = arith.maximumf %8, %9 : vector<2x20xf32>
    %cst_8 = arith.constant dense<0.000000e+00> : vector<2x20xf32>
    %11 = tpu.matmul %10, %4, %cst_8 {dimension_numbers = #tpu.dot_dimension_numbers<[1], [0], [0], [1], [0, 0, 1, 1], [], []>} : vector<2x20xf32>, vector<20x20xf32>, vector<2x20xf32> -> vector<2x20xf32>
    %12 = vector.broadcast %5 : vector<1x20xf32> to vector<2x20xf32>
    %13 = arith.addf %11, %12 : vector<2x20xf32>
    %14 = math.absf %13 : vector<2x20xf32>
    %cst_9 = arith.constant dense<0.000000e+00> : vector<2xf32>
    %15 = vector.multi_reduction <add>, %14, %cst_9 [1] : vector<2x20xf32> to vector<2xf32>
    %16 = vector.shape_cast %15 : vector<2xf32> to vector<2x1xf32>
    %cst_10 = arith.constant dense<0.000000e+00> : vector<1xf32>
    %17 = vector.multi_reduction <add>, %16, %cst_10 [0] : vector<2x1xf32> to vector<1xf32>
    %18 = vector.shape_cast %17 : vector<1xf32> to vector<1x1xf32>
    %cst_11 = arith.constant dense<0.000000e+00> : vector<2xf32>
    %19 = vector.multi_reduction <add>, %13, %cst_11 [1] : vector<2x20xf32> to vector<2xf32>
    %20 = vector.shape_cast %19 : vector<2xf32> to vector<2x1xf32>
    %cst_12 = arith.constant dense<0.000000e+00> : vector<1xf32>
    %21 = vector.multi_reduction <add>, %20, %cst_12 [0] : vector<2x1xf32> to vector<1xf32>
    %22 = vector.shape_cast %21 : vector<1xf32> to vector<1x1xf32>
    %23 = tpu.bitcast %18 : vector<1x1xf32> -> vector<1x1xi32>
    %c23_i32 = arith.constant 23 : i32
    %24 = vector.broadcast %c23_i32 : i32 to vector<1x1xi32>
    %25 = arith.shrui %23, %24 : vector<1x1xi32>
    %c127_i32 = arith.constant 127 : i32
    %26 = vector.broadcast %c127_i32 : i32 to vector<1x1xi32>
    %27 = arith.subi %25, %26 : vector<1x1xi32>
    %c8388607_i32 = arith.constant 8388607 : i32
    %28 = vector.broadcast %c8388607_i32 : i32 to vector<1x1xi32>
    %29 = arith.andi %23, %28 : vector<1x1xi32>
    %cst_13 = arith.constant 1.000000e+00 : f32
    %30 = vector.broadcast %cst_13 : f32 to vector<1x1xf32>
    %31 = arith.cmpf ogt, %18, %30 : vector<1x1xf32>
    %c0_i32 = arith.constant 0 : i32
    %32 = vector.broadcast %c0_i32 : i32 to vector<1x1xi32>
    %33 = arith.cmpi ne, %29, %32 : vector<1x1xi32>
    %34 = arith.extui %33 : vector<1x1xi1> to vector<1x1xi32>
    %35 = arith.addi %27, %34 : vector<1x1xi32>
    %c0_i32_14 = arith.constant 0 : i32
    %36 = vector.broadcast %c0_i32_14 : i32 to vector<1x1xi32>
    %37 = arith.select %31, %35, %36 : vector<1x1xi1>, vector<1x1xi32>
    %c127_i32_15 = arith.constant 127 : i32
    %38 = vector.broadcast %c127_i32_15 : i32 to vector<1x1xi32>
    %39 = arith.subi %38, %37 : vector<1x1xi32>
    %c23_i32_16 = arith.constant 23 : i32
    %40 = vector.broadcast %c23_i32_16 : i32 to vector<1x1xi32>
    %41 = arith.shli %39, %40 : vector<1x1xi32>
    %42 = tpu.bitcast %41 : vector<1x1xi32> -> vector<1x1xf32>
    %43 = arith.mulf %22, %42 : vector<1x1xf32>
    %c0_17 = arith.constant 0 : index
    %c0_18 = arith.constant 0 : index
    %c0_19 = arith.constant 0 : index
    %44 = vector.load %arg3[%c0_17, %c0_18, %c0_19] : memref<1x1x1xf32, #tpu.memory_space<vmem>>, vector<1x1x1xf32>
    %45 = vector.shape_cast %44 : vector<1x1x1xf32> to vector<1x1xf32>
    %46 = vector.shape_cast %43 : vector<1x1xf32> to vector<1x1x1xf32>
    tpu.vector_store %arg3[%c0_17, %c0_18, %c0_19], %46 {strides = array<i32>} : memref<1x1x1xf32, #tpu.memory_space<vmem>>, vector<1x1x1xf32>,
    return
  }
  func.func @transform_0(%arg0: i32) -> (i32, i32, i32) {
    %c0_i32 = arith.constant 0 : i32
    %c0_i32_0 = arith.constant 0 : i32
    %c0_i32_1 = arith.constant 0 : i32
    return %arg0, %c0_i32, %c0_i32_0 : i32, i32, i32
  }
  func.func @transform_1(%arg0: i32) -> (i32, i32) {
    %c0_i32 = arith.constant 0 : i32
    %c0_i32_0 = arith.constant 0 : i32
    %c0_i32_1 = arith.constant 0 : i32
    return %c0_i32, %c0_i32_0 : i32, i32
  }
  func.func @transform_2(%arg0: i32) -> (i32, i32, i32) {
    %c0_i32 = arith.constant 0 : i32
    %c0_i32_0 = arith.constant 0 : i32
    %c0_i32_1 = arith.constant 0 : i32
    return %arg0, %c0_i32, %c0_i32_0 : i32, i32, i32
  }
}

</mosaic_0001>

<llo_original>
// kernel: tpu_custom_call.1
$region0: #{tpu_custom_call.1}
  #allocation0 [shape = 'u32[]', space=smem, size = 0x4, offset = 0x4, fixed_abs, tag = 'smem constant byte address 0x4 - core index']
  #allocation1 [shape = 'u32[144,128]{1,0:T(1,128)}', space=vmem, size = 0x12000, scoped, tag = 'internal scratch']
  %s0 = inlined_call_operand.vmem [shape: f32[1,2,20], index: 0, kind: input, shape index: {}]
  %s1 = inlined_call_operand.vmem [shape: f32[48,20], index: 1, kind: input, shape index: {}]
  %s2 = inlined_call_operand.hbm [shape: f32[1,1,1], index: 2, kind: output, shape index: {}]
  %s3 = sld [smem:[#allocation0]]
  $region18: #{tpu_custom_call.1} parent=0
    _
  %s5 = ssub.s32 1, %s3
  %s6 = scalar_select 0, %s5, %s3
  $region1: #{tpu_custom_call.1} parent=0
    #allocation2 [shape = 'u8[512]{0}', space=vmem, size = 0x400, scoped, tag = 'output window, operand 0, single buffered']
    #allocation3 [shape = 's32[1]{0}', space=sflag, size = 0x4, scoped, tag = 'scoped memory for tpu_custom_call.1']
    %7 = vsyncpa [#allocation3], 0
    // Predicated region
    $region2: #{tpu_custom_call.1} parent=1 // pred_check
      _
    $region3: #{tpu_custom_call.1} parent=1 // pred_check_branch
      %9 = sbr.rel (0) target = $region5
    $region4: #{tpu_custom_call.1} parent=1 // pred_region
      _
    $region5: #{tpu_custom_call.1} parent=1 // pred_fallthru
      _
    // Predicated region
    $region6: #{tpu_custom_call.1} parent=1 // pred_check
      _
    $region7: #{tpu_custom_call.1} parent=1 // pred_check_branch
      %11 = sbr.rel (0) target = $region9
    $region8: #{tpu_custom_call.1} parent=1 // pred_region
      _
    $region9: #{tpu_custom_call.1} parent=1 // pred_fallthru
      _
    %v12 = vld [vmem:[%s0] sm:$0x3]
    %v13 = vld [vmem:[%s1] sm:$0xff]
    %v14 = vld [vmem:[%s1 + $0x8] sm:$0xff]
    %v15 = vld [vmem:[%s1 + $0x10] sm:$0xf]
    %v16 = vld [vmem:[%s1 + $0x14] sm:$0x1]
    %v17 = vld [vmem:[%s1 + $0x18] sm:$0xff]
    %v18 = vld [vmem:[%s1 + $0x20] sm:$0xff]
    %v19 = vld [vmem:[%s1 + $0x28] sm:$0xf]
    %v20 = vld [vmem:[%s1 + $0x2c] sm:$0x1]
    %v21 = vlaneseq
    %v22 = vshrl.u32 %v21, 7
    %v23 = vsub.s32 0, %v22
    %v24 = vrot.slane %v16, %v23
    %vm25 = vcmask 162816
    %v27 = vsel %vm25, %v12, 0
    %vm29 = vcmask 1043456
    %v31 = vsel %vm29, %v15, 0
    %33 = vmatprep.subr.mxu0 0.0
    %34 = vmatpush1.msra.mxu0 %v13
    %35 = vmatprep.subr.mxu0 0.0
    %36 = vmatpush1.msra.mxu0 %v14
    %37 = vmatprep.subr.mxu0 0.0
    %38 = vmatpush1.msra.mxu0 %v31
    %39 = vmatprep.subr.mxu0 0.0
    %40 = vmatpush1.msra.mxu0 0.0
    %41 = vmatprep.subr.mxu0 0.0
    %42 = vmatpush1.msra.mxu0 0.0
    %43 = vmatprep.subr.mxu0 0.0
    %44 = vmatpush1.msra.mxu0 0.0
    %45 = vmatprep.subr.mxu0 0.0
    %46 = vmatpush1.msra.mxu0 0.0
    %47 = vmatprep.subr.mxu0 0.0
    %48 = vmatpush1.msra.mxu0 0.0
    %49 = vmatprep.subr.mxu0 0.0
    %50 = vmatpush1.msra.mxu0 0.0
    %51 = vmatprep.subr.mxu0 0.0
    %52 = vmatpush1.msra.mxu0 0.0
    %53 = vmatprep.subr.mxu0 0.0
    %54 = vmatpush1.msra.mxu0 0.0
    %55 = vmatprep.subr.mxu0 0.0
    %56 = vmatpush1.msra.mxu0 0.0
    %57 = vmatprep.subr.mxu0 0.0
    %58 = vmatpush1.msra.mxu0 0.0
    %59 = vmatprep.subr.mxu0 0.0
    %60 = vmatpush1.msra.mxu0 0.0
    %61 = vmatprep.subr.mxu0 0.0
    %62 = vmatpush1.msra.mxu0 0.0
    %63 = vmatprep.subr.mxu0 0.0
    %64 = vmatpush1.msra.mxu0 0.0
    %65 = vmatprep.subr.mxu0 0.0
    %66 = vmatpush1.msra.mxu0 0.0
    %67 = vmatprep.subr.mxu0 0.0
    %68 = vmatpush1.msra.mxu0 0.0
    %69 = vmatprep.subr.mxu0 0.0
    %70 = vmatpush1.msra.mxu0 0.0
    %71 = vmatprep.subr.mxu0 0.0
    %72 = vmatpush1.msra.mxu0 0.0
    %73 = vmatprep.subr.mxu0 0.0
    %74 = vmatpush1.msra.mxu0 0.0
    %75 = vmatprep.subr.mxu0 0.0
    %76 = vmatpush1.msra.mxu0 0.0
    %77 = vmatprep.subr.mxu0 0.0
    %78 = vmatpush1.msra.mxu0 0.0
    %79 = vmatprep.subr.mxu0 0.0
    %80 = vmatpush1.msra.mxu0 0.0
    %81 = vmatprep.subr.mxu0 0.0
    %82 = vmatpush1.msra.mxu0 0.0
    %83 = vmatprep.subr.mxu0 0.0
    %84 = vmatpush1.msra.mxu0 0.0
    %85 = vmatprep.subr.mxu0 0.0
    %86 = vmatpush1.msra.mxu0 0.0
    %87 = vmatprep.subr.mxu0 0.0
    %88 = vmatpush1.msra.mxu0 0.0
    %89 = vmatprep.subr.mxu0 0.0
    %90 = vmatpush1.msra.mxu0 0.0
    %91 = vmatprep.subr.mxu0 0.0
    %92 = vmatpush1.msra.mxu0 0.0
    %93 = vmatprep.subr.mxu0 0.0
    %94 = vmatpush1.msra.mxu0 0.0
    %95 = vmatprep.subr.mxu0 0.0
    %96 = vmatpush1.msra.mxu0 0.0
    %97 = vmatprep.mubr.f32.mxu0 0.0
    %98 = vmatmul.mubr.f32.gmra.mrb[0].mxu0 %v27
    %v99 = vpop.f32.mrb[0].mxu0
    %v100 = vadd.f32 %v24, %v99
    %v101 = vpop.f32.mrb[0].mxu0
    %102 = vdwg.mxu0
    %v103 = vmax.f32 %v100, 0.0
    %v104 = vlaneseq
    %v105 = vshrl.u32 %v104, 7
    %v106 = vsub.s32 0, %v105
    %v107 = vrot.slane %v20, %v106
    %v109 = vsel %vm25, %v103, 0
    %v112 = vsel %vm29, %v19, 0
    %114 = vmatprep.subr.mxu0 0.0
    %115 = vmatpush1.msra.mxu0 %v17
    %116 = vmatprep.subr.mxu0 0.0
    %117 = vmatpush1.msra.mxu0 %v18
    %118 = vmatprep.subr.mxu0 0.0
    %119 = vmatpush1.msra.mxu0 %v112
    %120 = vmatprep.subr.mxu0 0.0
    %121 = vmatpush1.msra.mxu0 0.0
    %122 = vmatprep.subr.mxu0 0.0
    %123 = vmatpush1.msra.mxu0 0.0
    %124 = vmatprep.subr.mxu0 0.0
    %125 = vmatpush1.msra.mxu0 0.0
    %126 = vmatprep.subr.mxu0 0.0
    %127 = vmatpush1.msra.mxu0 0.0
    %128 = vmatprep.subr.mxu0 0.0
    %129 = vmatpush1.msra.mxu0 0.0
    %130 = vmatprep.subr.mxu0 0.0
    %131 = vmatpush1.msra.mxu0 0.0
    %132 = vmatprep.subr.mxu0 0.0
    %133 = vmatpush1.msra.mxu0 0.0
    %134 = vmatprep.subr.mxu0 0.0
    %135 = vmatpush1.msra.mxu0 0.0
    %136 = vmatprep.subr.mxu0 0.0
    %137 = vmatpush1.msra.mxu0 0.0
    %138 = vmatprep.subr.mxu0 0.0
    %139 = vmatpush1.msra.mxu0 0.0
    %140 = vmatprep.subr.mxu0 0.0
    %141 = vmatpush1.msra.mxu0 0.0
    %142 = vmatprep.subr.mxu0 0.0
    %143 = vmatpush1.msra.mxu0 0.0
    %144 = vmatprep.subr.mxu0 0.0
    %145 = vmatpush1.msra.mxu0 0.0
    %146 = vmatprep.subr.mxu0 0.0
    %147 = vmatpush1.msra.mxu0 0.0
    %148 = vmatprep.subr.mxu0 0.0
    %149 = vmatpush1.msra.mxu0 0.0
    %150 = vmatprep.subr.mxu0 0.0
    %151 = vmatpush1.msra.mxu0 0.0
    %152 = vmatprep.subr.mxu0 0.0
    %153 = vmatpush1.msra.mxu0 0.0
    %154 = vmatprep.subr.mxu0 0.0
    %155 = vmatpush1.msra.mxu0 0.0
    %156 = vmatprep.subr.mxu0 0.0
    %157 = vmatpush1.msra.mxu0 0.0
    %158 = vmatprep.subr.mxu0 0.0
    %159 = vmatpush1.msra.mxu0 0.0
    %160 = vmatprep.subr.mxu0 0.0
    %161 = vmatpush1.msra.mxu0 0.0
    %162 = vmatprep.subr.mxu0 0.0
    %163 = vmatpush1.msra.mxu0 0.0
    %164 = vmatprep.subr.mxu0 0.0
    %165 = vmatpush1.msra.mxu0 0.0
    %166 = vmatprep.subr.mxu0 0.0
    %167 = vmatpush1.msra.mxu0 0.0
    %168 = vmatprep.subr.mxu0 0.0
    %169 = vmatpush1.msra.mxu0 0.0
    %170 = vmatprep.subr.mxu0 0.0
    %171 = vmatpush1.msra.mxu0 0.0
    %172 = vmatprep.subr.mxu0 0.0
    %173 = vmatpush1.msra.mxu0 0.0
    %174 = vmatprep.subr.mxu0 0.0
    %175 = vmatpush1.msra.mxu0 0.0
    %176 = vmatprep.subr.mxu0 0.0
    %177 = vmatpush1.msra.mxu0 0.0
    %178 = vmatprep.mubr.f32.mxu0 0.0
    %179 = vmatmul.mubr.f32.gmra.mrb[0].mxu0 %v109
    %v180 = vpop.f32.mrb[0].mxu0
    %v181 = vadd.f32 %v107, %v180
    %v182 = vpop.f32.mrb[0].mxu0
    %183 = vdwg.mxu0
    %v184 = vand.u32 2147483647, %v181
    %vm185 = vcmask 156672
    %v186 = vsel %vm185, %v184, 0.0
    %187 = vadd.xlane.f32.xlu0 %v186
    %v188 = vpop.xlane.xlu0 %187
    %vm189 = vcmask 1041408
    %v190 = vsel %vm189, %v188, 0.0
    %v191 = vrot.slane %v190, 4
    %v192 = vadd.f32 %v190, %v191
    %v193 = vrot.slane %v192, 2
    %v194 = vadd.f32 %v192, %v193
    %v195 = vrot.slane %v194, 1
    %v196 = vadd.f32 %v194, %v195
    %v197 = vsel %vm185, %v181, 0.0
    %198 = vadd.xlane.f32.xlu0 %v197
    %v199 = vpop.xlane.xlu0 %198
    %v200 = vsel %vm189, %v199, 0.0
    %v201 = vrot.slane %v200, 4
    %v202 = vadd.f32 %v200, %v201
    %v203 = vrot.slane %v202, 2
    %v204 = vadd.f32 %v202, %v203
    %v205 = vrot.slane %v204, 1
    %v206 = vadd.f32 %v204, %v205
    %v208 = vshrl.u32 %v196, 23
    %v209 = vsub.s32 %v208, 127
    %v210 = vand.u32 %v196, 8388607
    %vm211 = vcmp.gt.f32.partialorder %v196, 1.0
    %vm212 = vcmp.ne.s32.totalorder %v210, 0
    %v213 = vsel %vm212, 1, 0
    %v214 = vadd.s32 %v209, %v213
    %v215 = vsel %vm211, %v214, 0
    %v216 = vsub.s32 127, %v215
    %v217 = vshll.u32 %v216, 23
    %v219 = vmul.f32 %v206, %v217
    %vm220 = vcmask 0
    %221 = vst.msk [vmem:[#allocation2] sm:$0x1] %vm220, %v219
    // Predicated region
    $region10: #{tpu_custom_call.1} parent=1 // pred_check
      _
    $region11: #{tpu_custom_call.1} parent=1 // pred_check_branch
      %223 = sbr.rel (0) target = $region13
    $region12: #{tpu_custom_call.1} parent=1 // pred_region
      %s225 = ssub.s32 16, 16
      %226 = vsyncadd [#allocation3], %s225
      %s228 = sshll.u32 [#allocation2], 4
      %s229 = int_to_ptr.vmem [resolvable:$true] %s228
      %231 = dma.vmem_to_hbm [thread:$0]  %s229, 16, %s2, [#allocation3]
    $region13: #{tpu_custom_call.1} parent=1 // pred_fallthru
      _
    // Predicated region
    $region14: #{tpu_custom_call.1} parent=1 // pred_check
      _
    $region15: #{tpu_custom_call.1} parent=1 // pred_check_branch
      %233 = sbr.rel (0) target = $region17
    $region16: #{tpu_custom_call.1} parent=1 // pred_region
      %234 = dma.done [#allocation3], 16
    $region17: #{tpu_custom_call.1} parent=1 // pred_fallthru
      _
    %235 = vsyncpa [#allocation3], 1

</llo_original>
